<compile_context>
chip_gen: v7x
topology: tpu7x:2x2x1
jax: 0.10.0
libtpu: 0.0.40
codegen_flags: <defaults>
</compile_context>

<pallas_src>
import jax
import jax.numpy as jnp
from jax.experimental import pallas as pl
from jax.experimental.pallas import tpu as pltpu


LANE = 128
MAX_TILE = 512   # measured knee for HBM-roofline efficiency (>= 512 lanes per tile)


def _time_tiling(T):
    """Pick a time tile (multiple of 128 lanes) and padded length (multiple of tile)."""
    tile = MAX_TILE if T > MAX_TILE else ((T + LANE - 1) // LANE) * LANE
    t_pad = ((T + tile - 1) // tile) * tile
    return tile, t_pad


# ---------------------------------------------------------------------------
# Pallas kernel: r[k,t] = exp(b + sum_{s=1..L} h[s-1] * spikes[k, t-s])
# (the einsum('tka,a->tk', X, theta) + exp of MMDGLM.forward, with theta folded into
#  the combined length-L filter h, so the kernel never reads the (T, K, A) design
#  matrix -> ~A x less HBM read traffic than the literal einsum.)
# ---------------------------------------------------------------------------
def glm_rates_from_spikes(spk_kt, b, h, T, tile):
    """spk_kt: (K, tile + T_pad) bf16; spikes.T at columns [tile, tile+T) behind a
    tile-wide zero history halo (bf16 is exact for 0/1 spikes).
    Returns r: (T, K) float32."""
    K, width = spk_kt.shape
    t_pad = width - tile
    L = int(h.shape[0])
    assert tile >= L, "one time tile (halo block) must cover the filter length"
    grid = (t_pad // tile,)

    # [b, h_1, ..., h_L] as f32 scalars in SMEM (scalar * vreg MACs on the VPU).
    params = jnp.concatenate(
        [jnp.reshape(b, (1,)).astype(jnp.float32), h.astype(jnp.float32)])

    def kernel(params_ref, halo_ref, cur_ref, r_ref):
        # halo = previous time tile (filter history), cur = current tile; both bf16.
        # One lane-aligned concat; the per-tap slices below start at non-128-aligned
        # lane offsets, so Mosaic emits lane rotates/selects (XLU + some VALU).  At
        # L ~ 10 the VPU MACs saturate first, so the VALU stays the binding slot.
        window = jnp.concatenate([halo_ref[...], cur_ref[...]], axis=1)  # (K, 2*tile)
        u = jnp.full(r_ref.shape, params_ref[0], jnp.float32)            # bias
        for s in range(1, L + 1):
            # Slice-then-upcast: no full f32 copy of the spike block is materialized.
            # TODO(synk): on v6e/v7x a bf16-tap x bf16-spike MAC (f32 accumulate)
            # would ~2x VALU throughput at large T, but rounds the taps to ~2^-8
            # relative; kept exact f32 to match the torch double-precision semantics.
            tap = window[:, tile - s: 2 * tile - s].astype(jnp.float32)
            u = u + params_ref[s] * tap
        r_ref[...] = jnp.exp(u)      # EUP exp; full-width unmasked 128-lane store

    out = pl.pallas_call(
        kernel,
        out_shape=jax.ShapeDtypeStruct((K, t_pad), jnp.float32),
        grid_spec=pltpu.PrefetchScalarGridSpec(
            num_scalar_prefetch=0,
            grid=grid,
            in_specs=[
                pl.BlockSpec(memory_space=pltpu.MemorySpace.SMEM),   # filter scalars
                pl.BlockSpec((K, tile), lambda i: (0, i)),       # halo: previous tile
                pl.BlockSpec((K, tile), lambda i: (0, i + 1)),   # current tile
            ],
            out_specs=pl.BlockSpec((K, tile), lambda i: (0, i)),
        ),
        # Per-step VMEM ~ 2 * (2*K*tile*2B bf16 in + K*tile*4B f32 out): a few tens of
        # KiB at K=8 even for tile=512, far under v7x's 32 MiB scoped VMEM.  If K
        # grows (pad K to 16 for bf16 sublane packing), shrink `tile` or raise
        # vmem_limit_bytes here and re-check.
        compiler_params=pltpu.CompilerParams(dimension_semantics=("parallel",)),
    )(params, spk_kt, spk_kt)        # same spike array passed twice (halo + current)

    # Padded columns [T, t_pad) evaluate exp(b + 0) and are dropped here.  The final
    # transpose back to the module's (T, K) contract is one XLA pass; keep (K, T)
    # downstream to skip it.  TODO(synk): if only reductions of r are consumed
    # (log-likelihood / MMD surrogate), fuse them into the kernel instead of writing
    # the full f32 r to HBM (the writeback dominates the kernel's HBM bytes).
    return out[:, :T].T


# ---------------------------------------------------------------------------
# Plain-JAX glue reproducing the surrounding forward() plumbing
# ---------------------------------------------------------------------------
def make_theta(u0, n_kappa, n_eta):
    """Deterministic parameter init mirroring MMDGLM.__init__/get_params():
    theta = [b, kappa_coefs, eta_coefs]."""
    b = jnp.array([u0], dtype=jnp.float32)
    kappa_coefs = 0.1 * jnp.arange(1, n_kappa + 1, dtype=jnp.float32)
    eta_coefs = -0.2 * jnp.arange(1, n_eta + 1, dtype=jnp.float32)
    return jnp.concatenate([b, kappa_coefs, eta_coefs])


def make_eta_basis(n_eta, length, dt):
    """Deterministic exponential spike-history basis (kappa=None / stim=None path)."""
    taus = 2.0 * dt * (jnp.arange(n_eta, dtype=jnp.float32) + 1.0)
    lags = dt * jnp.arange(1, length + 1, dtype=jnp.float32)
    return jnp.exp(-lags[None, :] / taus[:, None])          # (n_eta, L)


def sample_glm(key, T, K, b, h, dt, tile, t_pad):
    """Autoregressive GLM sampling with spike-history feedback (GLM.sample):
      u_t = b + sum_s h[s-1] * x_{t-s};  r = exp(u);  P(spike) = 1 - exp(-r*dt).

    Returns:
      spikes_tk: (T, K) f32 0/1 spikes (module-facing layout for mask / X_fr).
      spk_kt:    (K, tile + t_pad) bf16 kernel-layout buffer (spikes.T behind a
                 tile-wide zero history halo), built inside the scan carry so no
                 separate pad+transpose HBM pass is needed.
    TODO(synk): JAX RNG stream differs from the numpy RNG used by the torch GLM.sample.
    """
    L = h.shape[0]
    keys = jax.random.split(key, T)
    hist0 = jnp.zeros((L, K), jnp.float32)          # hist[s-1] = spikes at t - s
    buf0 = jnp.zeros((K, tile + t_pad), jnp.bfloat16)

    def step(carry, inp):
        hist, buf = carry
        t_idx, k_t = inp
        u = b + jnp.sum(h[:, None] * hist, axis=0)
        p = 1.0 - jnp.exp(-jnp.exp(u) * dt)
        x = jax.random.bernoulli(k_t, p).astype(jnp.float32)          # (K,)
        hist = jnp.concatenate([x[None, :], hist[:-1]], axis=0)
        buf = jax.lax.dynamic_update_slice(
            buf, x.astype(jnp.bfloat16)[:, None], (0, tile + t_idx))
        return (hist, buf), x

    (_, spk_kt), spikes_tk = jax.lax.scan(step, (hist0, buf0), (jnp.arange(T), keys))
    return spikes_tk, spk_kt


def design_matrix(mask_spikes, eta_basis):
    """X[:, :, 0] = 1 (bias); X[:, :, 1+j] = causal conv of spikes with eta basis j.
    Returned because forward() returns X, but NOT read by the Pallas kernel."""
    T, K = mask_spikes.shape
    n_eta, L = eta_basis.shape
    shifted = jnp.stack(
        [jnp.pad(mask_spikes, ((s, 0), (0, 0)))[:T] for s in range(1, L + 1)], axis=0)
    X_eta = jnp.einsum('jl,ltk->tkj', eta_basis, shifted)             # (T, K, n_eta)
    ones = jnp.ones((T, K, 1), dtype=jnp.float32)
    return jnp.concatenate([ones, X_eta], axis=-1)                    # (T, K, 1+n_eta)


def mmdglm_forward(key, t, theta, eta_basis, n_kappa, n_batch_fr):
    """Mirrors MMDGLM.forward(t, stim=None, n_batch_fr=...) -> (r_fr, mask_fr, X_fr).
    TODO(synk): stim / kappa stimulus-convolution path not implemented (stim=None only)."""
    dt = t[1] - t[0]
    T = t.shape[0]
    b = theta[0]
    eta_coefs = theta[1 + n_kappa:]                  # fixed: skip kappa coefficients
    h = jnp.einsum('j,jl->l', eta_coefs, eta_basis)  # combined length-L history filter

    tile, t_pad = _time_tiling(T)
    spikes_tk, spk_kt = sample_glm(key, T, n_batch_fr, b, h, dt, tile, t_pad)
    X_fr = design_matrix(spikes_tk, eta_basis)                 # torch return contract
    r_fr = glm_rates_from_spikes(spk_kt, b, h, T, tile)        # <-- Pallas kernel
    return r_fr, spikes_tk > 0.5, X_fr


if __name__ == "__main__":
    # Small shapes: T=64 time bins, K=8 free-running samples, kappa=None (stim=None
    # path), n_eta=7 history-basis functions of length 10 -> A = 1 + 0 + 7 = 8 params.
    # NOTE: at these shapes the kernel is a single vreg of work (grid=(1,)) and wall
    # clock is dominated by the T-step sampler scan; the tiled/parallel grid pays off
    # only when T (or K) grows by orders of magnitude.
    T, n_batch_fr = 64, 8
    n_kappa, n_eta, basis_len = 0, 7, 10
    dt = 0.1
    u0 = -1.0

    t = dt * jnp.arange(T, dtype=jnp.float32)
    theta = make_theta(u0, n_kappa, n_eta)                   # (8,)
    eta_basis = make_eta_basis(n_eta, basis_len, dt)         # (7, 10)

    key = jax.random.PRNGKey(0)
    r_fr, mask_spikes_fr, X_fr = mmdglm_forward(
        key, t, theta, eta_basis, n_kappa, n_batch_fr)
    r_fr = jax.block_until_ready(r_fr)

    # Reference: the original einsum('tka,a->tk') + exp against the returned X_fr.
    r_ref = jnp.exp(jnp.einsum("tka,a->tk", X_fr, theta))
    assert r_fr.shape == (T, n_batch_fr)
    assert mask_spikes_fr.shape == (T, n_batch_fr)
    assert X_fr.shape == (T, n_batch_fr, 1 + n_kappa + n_eta)
    assert jnp.allclose(r_fr, r_ref, rtol=1e-4, atol=1e-6)

    print("KERNEL_OK")
</pallas_src>

<mosaic_0001>
module attributes {stable_mosaic.version = 11 : i64} {
  func.func @kernel(%arg0: i32, %arg1: memref<11xf32, #tpu.memory_space<smem>>, %arg2: memref<8x128xbf16, #tpu.memory_space<vmem>>, %arg3: memref<8x128xbf16, #tpu.memory_space<vmem>>, %arg4: memref<8x128xf32, #tpu.memory_space<vmem>>) attributes {dimension_semantics = [#tpu.dimension_semantics<parallel>], iteration_bounds = array<i64: 1>, scalar_prefetch = 0 : i64, scratch_operands = 0 : i64, tpu.core_type = #tpu.core_type<tc>, window_params = [{transform_indices = @transform_0, window_bounds = array<i64: 11>}, {transform_indices = @transform_1, window_bounds = array<i64: 8, 128>}, {transform_indices = @transform_2, window_bounds = array<i64: 8, 128>}, {transform_indices = @transform_3, window_bounds = array<i64: 8, 128>}]} {
    %c0 = arith.constant 0 : index
    %c0_0 = arith.constant 0 : index
    %0 = vector.load %arg2[%c0, %c0_0] : memref<8x128xbf16, #tpu.memory_space<vmem>>, vector<8x128xbf16>
    %c0_1 = arith.constant 0 : index
    %c0_2 = arith.constant 0 : index
    %1 = vector.load %arg3[%c0_1, %c0_2] : memref<8x128xbf16, #tpu.memory_space<vmem>>, vector<8x128xbf16>
    %2 = tpu.concatenate %0, %1 in 1 : vector<8x128xbf16>, vector<8x128xbf16> -> vector<8x256xbf16>
    %c0_3 = arith.constant 0 : index
    %3 = memref.load %arg1[%c0_3] : memref<11xf32, #tpu.memory_space<smem>>
    %4 = vector.broadcast %3 : f32 to vector<8x128xf32>
    %5 = vector.extract_strided_slice %2 {offsets = [0, 127], sizes = [8, 128], strides = [1, 1]} : vector<8x256xbf16> to vector<8x128xbf16>
    %6 = arith.extf %5 : vector<8x128xbf16> to vector<8x128xf32>
    %c1 = arith.constant 1 : index
    %7 = memref.load %arg1[%c1] : memref<11xf32, #tpu.memory_space<smem>>
    %8 = vector.broadcast %7 : f32 to vector<8x128xf32>
    %9 = arith.mulf %8, %6 : vector<8x128xf32>
    %10 = arith.addf %4, %9 : vector<8x128xf32>
    %11 = vector.extract_strided_slice %2 {offsets = [0, 126], sizes = [8, 128], strides = [1, 1]} : vector<8x256xbf16> to vector<8x128xbf16>
    %12 = arith.extf %11 : vector<8x128xbf16> to vector<8x128xf32>
    %c2 = arith.constant 2 : index
    %13 = memref.load %arg1[%c2] : memref<11xf32, #tpu.memory_space<smem>>
    %14 = vector.broadcast %13 : f32 to vector<8x128xf32>
    %15 = arith.mulf %14, %12 : vector<8x128xf32>
    %16 = arith.addf %10, %15 : vector<8x128xf32>
    %17 = vector.extract_strided_slice %2 {offsets = [0, 125], sizes = [8, 128], strides = [1, 1]} : vector<8x256xbf16> to vector<8x128xbf16>
    %18 = arith.extf %17 : vector<8x128xbf16> to vector<8x128xf32>
    %c3 = arith.constant 3 : index
    %19 = memref.load %arg1[%c3] : memref<11xf32, #tpu.memory_space<smem>>
    %20 = vector.broadcast %19 : f32 to vector<8x128xf32>
    %21 = arith.mulf %20, %18 : vector<8x128xf32>
    %22 = arith.addf %16, %21 : vector<8x128xf32>
    %23 = vector.extract_strided_slice %2 {offsets = [0, 124], sizes = [8, 128], strides = [1, 1]} : vector<8x256xbf16> to vector<8x128xbf16>
    %24 = arith.extf %23 : vector<8x128xbf16> to vector<8x128xf32>
    %c4 = arith.constant 4 : index
    %25 = memref.load %arg1[%c4] : memref<11xf32, #tpu.memory_space<smem>>
    %26 = vector.broadcast %25 : f32 to vector<8x128xf32>
    %27 = arith.mulf %26, %24 : vector<8x128xf32>
    %28 = arith.addf %22, %27 : vector<8x128xf32>
    %29 = vector.extract_strided_slice %2 {offsets = [0, 123], sizes = [8, 128], strides = [1, 1]} : vector<8x256xbf16> to vector<8x128xbf16>
    %30 = arith.extf %29 : vector<8x128xbf16> to vector<8x128xf32>
    %c5 = arith.constant 5 : index
    %31 = memref.load %arg1[%c5] : memref<11xf32, #tpu.memory_space<smem>>
    %32 = vector.broadcast %31 : f32 to vector<8x128xf32>
    %33 = arith.mulf %32, %30 : vector<8x128xf32>
    %34 = arith.addf %28, %33 : vector<8x128xf32>
    %35 = vector.extract_strided_slice %2 {offsets = [0, 122], sizes = [8, 128], strides = [1, 1]} : vector<8x256xbf16> to vector<8x128xbf16>
    %36 = arith.extf %35 : vector<8x128xbf16> to vector<8x128xf32>
    %c6 = arith.constant 6 : index
    %37 = memref.load %arg1[%c6] : memref<11xf32, #tpu.memory_space<smem>>
    %38 = vector.broadcast %37 : f32 to vector<8x128xf32>
    %39 = arith.mulf %38, %36 : vector<8x128xf32>
    %40 = arith.addf %34, %39 : vector<8x128xf32>
    %41 = vector.extract_strided_slice %2 {offsets = [0, 121], sizes = [8, 128], strides = [1, 1]} : vector<8x256xbf16> to vector<8x128xbf16>
    %42 = arith.extf %41 : vector<8x128xbf16> to vector<8x128xf32>
    %c7 = arith.constant 7 : index
    %43 = memref.load %arg1[%c7] : memref<11xf32, #tpu.memory_space<smem>>
    %44 = vector.broadcast %43 : f32 to vector<8x128xf32>
    %45 = arith.mulf %44, %42 : vector<8x128xf32>
    %46 = arith.addf %40, %45 : vector<8x128xf32>
    %47 = vector.extract_strided_slice %2 {offsets = [0, 120], sizes = [8, 128], strides = [1, 1]} : vector<8x256xbf16> to vector<8x128xbf16>
    %48 = arith.extf %47 : vector<8x128xbf16> to vector<8x128xf32>
    %c8 = arith.constant 8 : index
    %49 = memref.load %arg1[%c8] : memref<11xf32, #tpu.memory_space<smem>>
    %50 = vector.broadcast %49 : f32 to vector<8x128xf32>
    %51 = arith.mulf %50, %48 : vector<8x128xf32>
    %52 = arith.addf %46, %51 : vector<8x128xf32>
    %53 = vector.extract_strided_slice %2 {offsets = [0, 119], sizes = [8, 128], strides = [1, 1]} : vector<8x256xbf16> to vector<8x128xbf16>
    %54 = arith.extf %53 : vector<8x128xbf16> to vector<8x128xf32>
    %c9 = arith.constant 9 : index
    %55 = memref.load %arg1[%c9] : memref<11xf32, #tpu.memory_space<smem>>
    %56 = vector.broadcast %55 : f32 to vector<8x128xf32>
    %57 = arith.mulf %56, %54 : vector<8x128xf32>
    %58 = arith.addf %52, %57 : vector<8x128xf32>
    %59 = vector.extract_strided_slice %2 {offsets = [0, 118], sizes = [8, 128], strides = [1, 1]} : vector<8x256xbf16> to vector<8x128xbf16>
    %60 = arith.extf %59 : vector<8x128xbf16> to vector<8x128xf32>
    %c10 = arith.constant 10 : index
    %61 = memref.load %arg1[%c10] : memref<11xf32, #tpu.memory_space<smem>>
    %62 = vector.broadcast %61 : f32 to vector<8x128xf32>
    %63 = arith.mulf %62, %60 : vector<8x128xf32>
    %64 = arith.addf %58, %63 : vector<8x128xf32>
    %65 = math.exp %64 : vector<8x128xf32>
    %c0_4 = arith.constant 0 : index
    %c0_5 = arith.constant 0 : index
    %66 = vector.load %arg4[%c0_4, %c0_5] : memref<8x128xf32, #tpu.memory_space<vmem>>, vector<8x128xf32>
    tpu.vector_store %arg4[%c0_4, %c0_5], %65 {strides = array<i32>} : memref<8x128xf32, #tpu.memory_space<vmem>>, vector<8x128xf32>,
    return
  }
  func.func @transform_0(%arg0: i32) -> i32 {
    %c0_i32 = arith.constant 0 : i32
    %c0_i32_0 = arith.constant 0 : i32
    return %c0_i32 : i32
  }
  func.func @transform_1(%arg0: i32) -> (i32, i32) {
    %c0_i32 = arith.constant 0 : i32
    %c0_i32_0 = arith.constant 0 : i32
    return %c0_i32, %arg0 : i32, i32
  }
  func.func @transform_2(%arg0: i32) -> (i32, i32) {
    %c1_i32 = arith.constant 1 : i32
    %0 = arith.addi %arg0, %c1_i32 : i32
    %c0_i32 = arith.constant 0 : i32
    %c0_i32_0 = arith.constant 0 : i32
    return %c0_i32, %0 : i32, i32
  }
  func.func @transform_3(%arg0: i32) -> (i32, i32) {
    %c0_i32 = arith.constant 0 : i32
    %c0_i32_0 = arith.constant 0 : i32
    return %c0_i32, %arg0 : i32, i32
  }
}

</mosaic_0001>

<llo_original>
// kernel: tpu_custom_call.1
$region0: #{tpu_custom_call.1}
  #allocation0 [shape = 'u32[]', space=smem, size = 0x4, offset = 0x4, fixed_abs, tag = 'smem constant byte address 0x4 - core index']
  #allocation1 [shape = 'u32[144,128]{1,0:T(1,128)}', space=vmem, size = 0x12000, scoped, tag = 'internal scratch']
  %s0 = inlined_call_operand.hbm [shape: f32[11], index: 0, kind: input, shape index: {}]
  %s1 = inlined_call_operand.hbm [shape: bf16[8,256], index: 1, kind: input, shape index: {}]
  %s2 = inlined_call_operand.hbm [shape: bf16[8,256], index: 2, kind: input, shape index: {}]
  %s3 = inlined_call_operand.hbm [shape: f32[8,128], index: 3, kind: output, shape index: {}]
  %s4 = sld [smem:[#allocation0]]
  $region34: #{tpu_custom_call.1} parent=0
    _
  %s6 = ssub.s32 1, %s4
  %s7 = scalar_select 0, %s6, %s4
  $region1: #{tpu_custom_call.1} parent=0
    #allocation2 [shape = 'u8[512]{0}', space=smem, size = 0x200, scoped, tag = 'input window, operand 0, single buffered']
    #allocation3 [shape = 's32[1]{0}', space=sflag, size = 0x4, scoped, tag = 'scoped memory for tpu_custom_call.1']
    #allocation4 [shape = 's32[1]{0}', space=sflag, size = 0x4, scoped, tag = 'scoped memory for tpu_custom_call.1']
    #allocation5 [shape = 's32[1]{0}', space=sflag, size = 0x4, scoped, tag = 'scoped memory for tpu_custom_call.1']
    #allocation6 [shape = 'u8[2048]{0}', space=vmem, size = 0x800, scoped, tag = 'input window, operand 1, single buffered']
    #allocation7 [shape = 'u8[2048]{0}', space=vmem, size = 0x800, scoped, tag = 'input window, operand 2, single buffered']
    #allocation8 [shape = 's32[1]{0}', space=sflag, size = 0x4, scoped, tag = 'scoped memory for tpu_custom_call.1']
    #allocation9 [shape = 'u8[4096]{0}', space=vmem, size = 0x1000, scoped, tag = 'output window, operand 0, single buffered']
    %8 = vsyncpa [#allocation5], 0
    %9 = vsyncpa [#allocation3], 0
    %10 = vsyncpa [#allocation8], 0
    %11 = vsyncpa [#allocation4], 0
    // Predicated region
    $region2: #{tpu_custom_call.1} parent=1 // pred_check
      _
    $region3: #{tpu_custom_call.1} parent=1 // pred_check_branch
      %13 = sbr.rel (0) target = $region5
    $region4: #{tpu_custom_call.1} parent=1 // pred_region
      %s15 = ssub.s32 16, 16
      %16 = vsyncadd [#allocation5], %s15
      %19 = dma.hbm_to_smem %s0, 16, [#allocation2], [#allocation5]
    $region5: #{tpu_custom_call.1} parent=1 // pred_fallthru
      _
    // Predicated region
    $region6: #{tpu_custom_call.1} parent=1 // pred_check
      _
    $region7: #{tpu_custom_call.1} parent=1 // pred_check_branch
      %21 = sbr.rel (0) target = $region9
    $region8: #{tpu_custom_call.1} parent=1 // pred_region
      %s23 = ssub.s32 64, 64
      %24 = vsyncadd [#allocation3], %s23
      %s26 = sshll.u32 [#allocation6], 4
      %s27 = int_to_ptr.vmem [resolvable:$true] %s26
      %29 = dma.hbm_to_vmem [thread:$0]  %s1, 64, %s27, [#allocation3]
    $region9: #{tpu_custom_call.1} parent=1 // pred_fallthru
      _
    // Predicated region
    $region10: #{tpu_custom_call.1} parent=1 // pred_check
      _
    $region11: #{tpu_custom_call.1} parent=1 // pred_check_branch
      %31 = sbr.rel (0) target = $region13
    $region12: #{tpu_custom_call.1} parent=1 // pred_region
      %s32 = sadd.s32 0, 1
      %s34 = ssub.s32 64, 64
      %35 = vsyncadd [#allocation8], %s34
      %s36 = smul.addr %s32, 64
      %s37 = scalar_lea.hbm %s2, %s36
      %s39 = sshll.u32 [#allocation7], 4
      %s40 = int_to_ptr.vmem [resolvable:$true] %s39
      %42 = dma.hbm_to_vmem [thread:$0]  %s37, 64, %s40, [#allocation8]
    $region13: #{tpu_custom_call.1} parent=1 // pred_fallthru
      _
    // Predicated region
    $region14: #{tpu_custom_call.1} parent=1 // pred_check
      _
    $region15: #{tpu_custom_call.1} parent=1 // pred_check_branch
      %44 = sbr.rel (0) target = $region17
    $region16: #{tpu_custom_call.1} parent=1 // pred_region
      %45 = dma.done [#allocation5], 16
    $region17: #{tpu_custom_call.1} parent=1 // pred_fallthru
      _
    // Predicated region
    $region18: #{tpu_custom_call.1} parent=1 // pred_check
      _
    $region19: #{tpu_custom_call.1} parent=1 // pred_check_branch
      %47 = sbr.rel (0) target = $region21
    $region20: #{tpu_custom_call.1} parent=1 // pred_region
      %48 = dma.done [#allocation3], 64
    $region21: #{tpu_custom_call.1} parent=1 // pred_fallthru
      _
    // Predicated region
    $region22: #{tpu_custom_call.1} parent=1 // pred_check
      _
    $region23: #{tpu_custom_call.1} parent=1 // pred_check_branch
      %50 = sbr.rel (0) target = $region25
    $region24: #{tpu_custom_call.1} parent=1 // pred_region
      %51 = dma.done [#allocation8], 64
    $region25: #{tpu_custom_call.1} parent=1 // pred_fallthru
      _
    %52 = sfence
    %s53 = sadd.s32 0, 1
    %v54 = vld [vmem:[#allocation6] sm:$0xf]
    %v55 = vld [vmem:[#allocation7] sm:$0xf]
    %s56 = sld [smem:[#allocation2]]
    %v57 = vstv %s56
    %v58 = vunpack.c.l.bf16 %v54
    %v59 = vunpack.c.l.bf16 %v55
    %s60 = sld [smem:[#allocation2 + $0x1]]
    %v61 = vstv %s60
    %v62 = vmul.f32 %v61, %v58
    %v63 = vmul.f32 %v61, %v59
    %v64 = vadd.f32 %v57, %v62
    %v65 = vadd.f32 %v57, %v63
    %s66 = sld [smem:[#allocation2 + $0x2]]
    %v67 = vstv %s66
    %v68 = vmul.f32 %v67, %v58
    %v69 = vmul.f32 %v67, %v59
    %72 = vrot.lane.b32.xlu0 %v68, 1
    %v73 = vpop.permute.xlu0 %72
    %74 = vrot.lane.b32.xlu0 %v69, 1
    %v75 = vpop.permute.xlu0 %74
    %vm76 = vcmask 7168
    %v77 = vsel %vm76, %v73, %v75
    %v80 = vadd.f32 %v64, %v73
    %v81 = vadd.f32 %v65, %v77
    %s82 = sld [smem:[#allocation2 + $0x3]]
    %v83 = vstv %s82
    %v84 = vmul.f32 %v83, %v58
    %v85 = vmul.f32 %v83, %v59
    %88 = vrot.lane.b32.xlu0 %v84, 2
    %v89 = vpop.permute.xlu0 %88
    %90 = vrot.lane.b32.xlu0 %v85, 2
    %v91 = vpop.permute.xlu0 %90
    %vm92 = vcmask 15360
    %v93 = vsel %vm92, %v89, %v91
    %v96 = vadd.f32 %v80, %v89
    %v97 = vadd.f32 %v81, %v93
    %s98 = sld [smem:[#allocation2 + $0x4]]
    %v99 = vstv %s98
    %v100 = vmul.f32 %v99, %v58
    %v101 = vmul.f32 %v99, %v59
    %104 = vrot.lane.b32.xlu0 %v100, 3
    %v105 = vpop.permute.xlu0 %104
    %106 = vrot.lane.b32.xlu0 %v101, 3
    %v107 = vpop.permute.xlu0 %106
    %vm108 = vcmask 23552
    %v109 = vsel %vm108, %v105, %v107
    %v112 = vadd.f32 %v96, %v105
    %v113 = vadd.f32 %v97, %v109
    %s114 = sld [smem:[#allocation2 + $0x5]]
    %v115 = vstv %s114
    %v116 = vmul.f32 %v115, %v58
    %v117 = vmul.f32 %v115, %v59
    %120 = vrot.lane.b32.xlu0 %v116, 4
    %v121 = vpop.permute.xlu0 %120
    %122 = vrot.lane.b32.xlu0 %v117, 4
    %v123 = vpop.permute.xlu0 %122
    %vm124 = vcmask 31744
    %v125 = vsel %vm124, %v121, %v123
    %v128 = vadd.f32 %v112, %v121
    %v129 = vadd.f32 %v113, %v125
    %s130 = sld [smem:[#allocation2 + $0x6]]
    %v131 = vstv %s130
    %v132 = vmul.f32 %v131, %v58
    %v133 = vmul.f32 %v131, %v59
    %136 = vrot.lane.b32.xlu0 %v132, 5
    %v137 = vpop.permute.xlu0 %136
    %138 = vrot.lane.b32.xlu0 %v133, 5
    %v139 = vpop.permute.xlu0 %138
    %vm140 = vcmask 39936
    %v141 = vsel %vm140, %v137, %v139
    %v144 = vadd.f32 %v128, %v137
    %v145 = vadd.f32 %v129, %v141
    %s146 = sld [smem:[#allocation2 + $0x7]]
    %v147 = vstv %s146
    %v148 = vmul.f32 %v147, %v58
    %v149 = vmul.f32 %v147, %v59
    %152 = vrot.lane.b32.xlu0 %v148, 6
    %v153 = vpop.permute.xlu0 %152
    %154 = vrot.lane.b32.xlu0 %v149, 6
    %v155 = vpop.permute.xlu0 %154
    %vm156 = vcmask 48128
    %v157 = vsel %vm156, %v153, %v155
    %v160 = vadd.f32 %v144, %v153
    %v161 = vadd.f32 %v145, %v157
    %s162 = sld [smem:[#allocation2 + $0x8]]
    %v163 = vstv %s162
    %v164 = vmul.f32 %v163, %v58
    %v165 = vmul.f32 %v163, %v59
    %168 = vrot.lane.b32.xlu0 %v164, 7
    %v169 = vpop.permute.xlu0 %168
    %170 = vrot.lane.b32.xlu0 %v165, 7
    %v171 = vpop.permute.xlu0 %170
    %vm172 = vcmask 56320
    %v173 = vsel %vm172, %v169, %v171
    %v176 = vadd.f32 %v160, %v169
    %v177 = vadd.f32 %v161, %v173
    %s178 = sld [smem:[#allocation2 + $0x9]]
    %v179 = vstv %s178
    %v180 = vmul.f32 %v179, %v58
    %v181 = vmul.f32 %v179, %v59
    %184 = vrot.lane.b32.xlu0 %v180, 8
    %v185 = vpop.permute.xlu0 %184
    %186 = vrot.lane.b32.xlu0 %v181, 8
    %v187 = vpop.permute.xlu0 %186
    %vm188 = vcmask 64512
    %v189 = vsel %vm188, %v185, %v187
    %v192 = vadd.f32 %v176, %v185
    %v193 = vadd.f32 %v177, %v189
    %s194 = sld [smem:[#allocation2 + $0xa]]
    %v195 = vstv %s194
    %v196 = vmul.f32 %v195, %v58
    %v197 = vmul.f32 %v195, %v59
    %200 = vrot.lane.b32.xlu0 %v196, 9
    %v201 = vpop.permute.xlu0 %200
    %202 = vrot.lane.b32.xlu0 %v197, 9
    %v203 = vpop.permute.xlu0 %202
    %vm204 = vcmask 72704
    %v205 = vsel %vm204, %v201, %v203
    %v208 = vadd.f32 %v192, %v201
    %v209 = vadd.f32 %v193, %v205
    %v210 = vmul.f32 %v208, 1.442695
    %v211 = vpow.pop %v210
    %v212 = vmul.f32 %v209, 1.442695
    %v213 = vpow.pop %v212
    %216 = vrot.lane.b32.xlu0 %v211, 1
    %v217 = vpop.permute.xlu0 %216
    %218 = vrot.lane.b32.xlu0 %v213, 1
    %v219 = vpop.permute.xlu0 %218
    %v220 = vsel %vm76, %v217, %v219
    %222 = vst [vmem:[#allocation9] sm:$0xff] %v220
    // Predicated region
    $region26: #{tpu_custom_call.1} parent=1 // pred_check
      _
    $region27: #{tpu_custom_call.1} parent=1 // pred_check_branch
      %224 = sbr.rel (0) target = $region29
    $region28: #{tpu_custom_call.1} parent=1 // pred_region
      %s226 = ssub.s32 128, 128
      %227 = vsyncadd [#allocation4], %s226
      %s229 = sshll.u32 [#allocation9], 4
      %s230 = int_to_ptr.vmem [resolvable:$true] %s229
      %232 = dma.vmem_to_hbm [thread:$0]  %s230, 128, %s3, [#allocation4]
    $region29: #{tpu_custom_call.1} parent=1 // pred_fallthru
      _
    // Predicated region
    $region30: #{tpu_custom_call.1} parent=1 // pred_check
      _
    $region31: #{tpu_custom_call.1} parent=1 // pred_check_branch
      %234 = sbr.rel (0) target = $region33
    $region32: #{tpu_custom_call.1} parent=1 // pred_region
      %235 = dma.done [#allocation4], 128
    $region33: #{tpu_custom_call.1} parent=1 // pred_fallthru
      _
    %236 = vsyncpa [#allocation3], 1
    %237 = vsyncpa [#allocation8], 1
    %238 = vsyncpa [#allocation4], 1
    %239 = vsyncpa [#allocation5], 1

</llo_original>
